<compile_context>
chip_gen: v5e
topology: v5e:2x2
jax: 0.10.0
libtpu: 0.0.40
codegen_flags: <defaults>
</compile_context>

<pallas_src>
import jax
import jax.numpy as jnp
from jax.experimental import pallas as pl
from jax.experimental.pallas import tpu as pltpu


# ---------------------------------------------------------------------------
# Fused forward kernel (one image per grid step)
# ---------------------------------------------------------------------------
def _fused_forward_kernel(x_ref, w1_ref, b1_ref, w2_ref, b2_ref,
                          wh_ref, bl_ref, o_ref, pad_ref):
    # x_ref:   (1, H+2, W*Cin)  one image, rows = H (vertically zero-padded),
    #                           lanes = W*Cin (horizontal pad folded into w1).
    # w1_ref:  (KH, W*Cin, W*C1) banded conv1 weights, BN1 scale folded in.
    # b1_ref:  (1, W*C1)         BN1 shift tiled over W.
    # w2_ref:  (KH, W*C1, W*C2)  banded conv2 weights, BN2 scale folded in.
    # b2_ref:  (1, W*C2)         BN2 shift tiled over W.
    # wh_ref:  (W*C2, K)         head weights, 1/(H*W) pooling factor folded in.
    # bl_ref:  (1, K)            head bias.
    # o_ref:   (1, 1, K)         logits for this image.
    # pad_ref: (H+2, W*C1)       VMEM scratch: vertically padded activation 1.
    h = x_ref.shape[1] - 2
    kh_taps = w1_ref.shape[0]

    # --- conv1 + folded BN + ReLU: KH banded matmuls, all on the MXU ---------
    acc1 = jnp.dot(x_ref[0, 0:h, :], w1_ref[0],
                   preferred_element_type=jnp.float32)
    for kh in range(1, kh_taps):
        acc1 = acc1 + jnp.dot(x_ref[0, kh:kh + h, :], w1_ref[kh],
                              preferred_element_type=jnp.float32)
    act1 = jnp.maximum(acc1 + b1_ref[...], 0.0)              # (H, W*C1)

    # --- vertical zero-pad of act1, kept resident in VMEM -------------------
    pad_ref[...] = jnp.zeros_like(pad_ref)
    pad_ref[1:1 + h, :] = act1

    # --- conv2 + folded BN + ReLU -------------------------------------------
    acc2 = jnp.dot(pad_ref[0:h, :], w2_ref[0],
                   preferred_element_type=jnp.float32)
    for kh in range(1, kh_taps):
        acc2 = acc2 + jnp.dot(pad_ref[kh:kh + h, :], w2_ref[kh],
                              preferred_element_type=jnp.float32)
    act2 = jnp.maximum(acc2 + b2_ref[...], 0.0)              # (H, W*C2)

    # --- head: global average pool (scale folded into wh) + linear ----------
    ones_row = jnp.ones((1, h), jnp.float32)
    pooled = jnp.dot(ones_row, act2,
                     preferred_element_type=jnp.float32)      # (1, W*C2)
    logits = jnp.dot(pooled, wh_ref[...],
                     preferred_element_type=jnp.float32) + bl_ref[...]
    o_ref[0] = logits.astype(o_ref.dtype)


# ---------------------------------------------------------------------------
# Host-side (one-time) weight packing
# ---------------------------------------------------------------------------
def _banded_conv_weights(w_hwio, bn_scale, width):
    """Fold BN scale into the HWIO conv weight and expand it into KH banded
    (W*Cin, W*Cout) matrices that realize the horizontal SAME padding."""
    n_kh, n_kw, cin, cout = w_hwio.shape
    w = w_hwio * bn_scale                                   # fold BN scale (Cout)
    p = jnp.arange(width)[None, :, None]                    # input column
    wo = jnp.arange(width)[None, None, :]                   # output column
    k = jnp.arange(n_kw)[:, None, None]                     # kernel tap
    sel = (p == wo + k - (n_kw // 2)).astype(w.dtype)       # (KW, W, W)
    band = jnp.einsum('kpw,hkio->hpiwo', sel, w)            # (KH, W, Cin, W, Cout)
    return band.reshape(n_kh, width * cin, width * cout)


def pack_params(params, H, W):
    (w1, s1, t1), (w2, s2, t2) = params["features"]
    wl, bl = params["head"]
    return {
        "w1b": _banded_conv_weights(w1, s1, W),             # (3, W*Cin, W*C1)
        "b1":  jnp.tile(t1, W)[None, :],                    # (1, W*C1)
        "w2b": _banded_conv_weights(w2, s2, W),             # (3, W*C1, W*C2)
        "b2":  jnp.tile(t2, W)[None, :],                    # (1, W*C2)
        "wh":  jnp.tile(wl / float(H * W), (W, 1)),         # (W*C2, K)
        "bl":  bl[None, :],                                 # (1, K)
    }


# ---------------------------------------------------------------------------
# Forward wrapper
# ---------------------------------------------------------------------------
@jax.jit
def model_wrapper_forward(x_nchw, packed):
    """forward: x = features(x); x = head(x) — single fused Pallas kernel."""
    N, Cin, H, W = x_nchw.shape
    Hp = H + 2
    x = jnp.transpose(x_nchw, (0, 2, 3, 1))                 # NCHW -> NHWC
    x = jnp.pad(x, ((0, 0), (1, 1), (0, 0), (0, 0)))        # vertical pad only
    x = x.reshape(N, Hp, W * Cin)                           # lane-dense rows

    WC1 = packed["b1"].shape[1]
    WC2 = packed["b2"].shape[1]
    K = packed["bl"].shape[1]

    out = pl.pallas_call(
        _fused_forward_kernel,
        out_shape=jax.ShapeDtypeStruct((N, 1, K), jnp.float32),
        grid=(N,),
        in_specs=[
            pl.BlockSpec((1, Hp, W * Cin), lambda n: (n, 0, 0)),
            pl.BlockSpec(packed["w1b"].shape, lambda n: (0, 0, 0)),
            pl.BlockSpec((1, WC1), lambda n: (0, 0)),
            pl.BlockSpec(packed["w2b"].shape, lambda n: (0, 0, 0)),
            pl.BlockSpec((1, WC2), lambda n: (0, 0)),
            pl.BlockSpec((WC2, K), lambda n: (0, 0)),
            pl.BlockSpec((1, K), lambda n: (0, 0)),
        ],
        out_specs=pl.BlockSpec((1, 1, K), lambda n: (n, 0, 0)),
        scratch_shapes=[pltpu.VMEM((Hp, WC1), jnp.float32)],
        compiler_params=pltpu.CompilerParams(
            dimension_semantics=("parallel",)),
    )(x, packed["w1b"], packed["b1"], packed["w2b"], packed["b2"],
      packed["wh"], packed["bl"])
    return out.reshape(N, K)


# ---------------------------------------------------------------------------
# Deterministic parameter init (mirrors ModelWrapper.__init__)
# ---------------------------------------------------------------------------
def init_params(key):
    k1, k2, k3 = jax.random.split(key, 3)

    def kaiming_hwio(k, KH, KW, Cin, Cout):
        # kaiming_normal_(mode='fan_out'): std = sqrt(2 / (Cout*KH*KW))
        std = (2.0 / (Cout * KH * KW)) ** 0.5
        return std * jax.random.normal(k, (KH, KW, Cin, Cout), jnp.float32)

    def bn_fold(c, eps=1e-5):
        gamma = jnp.ones((c,), jnp.float32)
        beta = jnp.zeros((c,), jnp.float32)
        mean = jnp.zeros((c,), jnp.float32)
        var = jnp.ones((c,), jnp.float32)
        scale = gamma / jnp.sqrt(var + eps)
        shift = beta - mean * scale
        return scale, shift

    w1 = kaiming_hwio(k1, 3, 3, 4, 8)
    s1, t1 = bn_fold(8)
    w2 = kaiming_hwio(k2, 3, 3, 8, 16)
    s2, t2 = bn_fold(16)
    wl = 0.01 * jax.random.normal(k3, (16, 10), jnp.float32)
    bl = jnp.zeros((10,), jnp.float32)
    return {"features": [(w1, s1, t1), (w2, s2, t2)], "head": (wl, bl)}


# ---------------------------------------------------------------------------
# Pure-JAX reference (for correctness check)
# ---------------------------------------------------------------------------
def ref_forward(x_nchw, params):
    x = jnp.transpose(x_nchw, (0, 2, 3, 1))
    for w, s, t in params["features"]:
        y = jax.lax.conv_general_dilated(
            x, w, window_strides=(1, 1), padding="SAME",
            dimension_numbers=("NHWC", "HWIO", "NHWC"))
        x = jnp.maximum(y * s + t, 0.0)
    pooled = jnp.mean(x, axis=(1, 2))
    wl, bl = params["head"]
    return pooled @ wl + bl


if __name__ == "__main__":
    key = jax.random.PRNGKey(0)
    kx, kp = jax.random.split(key)
    x = jax.random.normal(kx, (2, 4, 16, 16), jnp.float32)  # NCHW like PyTorch
    params = init_params(kp)
    packed = pack_params(params, H=16, W=16)

    out = jax.block_until_ready(model_wrapper_forward(x, packed))
    ref = jax.block_until_ready(ref_forward(x, params))

    assert out.shape == (2, 10), out.shape
    assert jnp.allclose(out, ref, atol=5e-4, rtol=5e-4), "mismatch vs reference"
    print("KERNEL_OK")
</pallas_src>

<mosaic_0001>
module attributes {stable_mosaic.version = 11 : i64} {
  func.func @_fused_forward_kernel(%arg0: i32, %arg1: memref<1x18x64xf32, #tpu.memory_space<vmem>>, %arg2: memref<3x64x128xf32, #tpu.memory_space<vmem>>, %arg3: memref<1x128xf32, #tpu.memory_space<vmem>>, %arg4: memref<3x128x256xf32, #tpu.memory_space<vmem>>, %arg5: memref<1x256xf32, #tpu.memory_space<vmem>>, %arg6: memref<256x10xf32, #tpu.memory_space<vmem>>, %arg7: memref<1x10xf32, #tpu.memory_space<vmem>>, %arg8: memref<1x1x10xf32, #tpu.memory_space<vmem>>, %arg9: memref<18x128xf32, #tpu.memory_space<vmem>>) attributes {dimension_semantics = [#tpu.dimension_semantics<parallel>], iteration_bounds = array<i64: 2>, scalar_prefetch = 0 : i64, scratch_operands = 1 : i64, tpu.core_type = #tpu.core_type<tc>, window_params = [{transform_indices = @transform_0, window_bounds = array<i64: 1, 18, 64>}, {pipeline_mode = #tpu.pipeline_mode<synchronous>, transform_indices = @transform_1, window_bounds = array<i64: 3, 64, 128>}, {pipeline_mode = #tpu.pipeline_mode<synchronous>, transform_indices = @transform_2, window_bounds = array<i64: 1, 128>}, {pipeline_mode = #tpu.pipeline_mode<synchronous>, transform_indices = @transform_3, window_bounds = array<i64: 3, 128, 256>}, {pipeline_mode = #tpu.pipeline_mode<synchronous>, transform_indices = @transform_4, window_bounds = array<i64: 1, 256>}, {pipeline_mode = #tpu.pipeline_mode<synchronous>, transform_indices = @transform_5, window_bounds = array<i64: 256, 10>}, {pipeline_mode = #tpu.pipeline_mode<synchronous>, transform_indices = @transform_6, window_bounds = array<i64: 1, 10>}, {transform_indices = @transform_7, window_bounds = array<i64: 1, 1, 10>}]} {
    %c0 = arith.constant 0 : index
    %c0_0 = arith.constant 0 : index
    %c0_1 = arith.constant 0 : index
    %0 = vector.load %arg1[%c0, %c0_0, %c0_1] : memref<1x18x64xf32, #tpu.memory_space<vmem>>, vector<1x16x64xf32>
    %1 = vector.shape_cast %0 : vector<1x16x64xf32> to vector<16x64xf32>
    %c0_2 = arith.constant 0 : index
    %c0_3 = arith.constant 0 : index
    %c0_4 = arith.constant 0 : index
    %2 = vector.load %arg2[%c0_2, %c0_3, %c0_4] : memref<3x64x128xf32, #tpu.memory_space<vmem>>, vector<1x64x128xf32>
    %3 = vector.shape_cast %2 : vector<1x64x128xf32> to vector<64x128xf32>
    %cst = arith.constant dense<0.000000e+00> : vector<16x128xf32>
    %4 = tpu.matmul %1, %3, %cst {dimension_numbers = #tpu.dot_dimension_numbers<[1], [0], [0], [1], [0, 0, 1, 1], [], []>} : vector<16x64xf32>, vector<64x128xf32>, vector<16x128xf32> -> vector<16x128xf32>
    %c0_5 = arith.constant 0 : index
    %c1 = arith.constant 1 : index
    %c0_6 = arith.constant 0 : index
    %5 = vector.load %arg1[%c0_5, %c1, %c0_6] : memref<1x18x64xf32, #tpu.memory_space<vmem>>, vector<1x16x64xf32>
    %6 = vector.shape_cast %5 : vector<1x16x64xf32> to vector<16x64xf32>
    %c1_7 = arith.constant 1 : index
    %c0_8 = arith.constant 0 : index
    %c0_9 = arith.constant 0 : index
    %7 = vector.load %arg2[%c1_7, %c0_8, %c0_9] : memref<3x64x128xf32, #tpu.memory_space<vmem>>, vector<1x64x128xf32>
    %8 = vector.shape_cast %7 : vector<1x64x128xf32> to vector<64x128xf32>
    %cst_10 = arith.constant dense<0.000000e+00> : vector<16x128xf32>
    %9 = tpu.matmul %6, %8, %cst_10 {dimension_numbers = #tpu.dot_dimension_numbers<[1], [0], [0], [1], [0, 0, 1, 1], [], []>} : vector<16x64xf32>, vector<64x128xf32>, vector<16x128xf32> -> vector<16x128xf32>
    %10 = arith.addf %4, %9 : vector<16x128xf32>
    %c0_11 = arith.constant 0 : index
    %c2 = arith.constant 2 : index
    %c0_12 = arith.constant 0 : index
    %11 = vector.load %arg1[%c0_11, %c2, %c0_12] : memref<1x18x64xf32, #tpu.memory_space<vmem>>, vector<1x16x64xf32>
    %12 = vector.shape_cast %11 : vector<1x16x64xf32> to vector<16x64xf32>
    %c2_13 = arith.constant 2 : index
    %c0_14 = arith.constant 0 : index
    %c0_15 = arith.constant 0 : index
    %13 = vector.load %arg2[%c2_13, %c0_14, %c0_15] : memref<3x64x128xf32, #tpu.memory_space<vmem>>, vector<1x64x128xf32>
    %14 = vector.shape_cast %13 : vector<1x64x128xf32> to vector<64x128xf32>
    %cst_16 = arith.constant dense<0.000000e+00> : vector<16x128xf32>
    %15 = tpu.matmul %12, %14, %cst_16 {dimension_numbers = #tpu.dot_dimension_numbers<[1], [0], [0], [1], [0, 0, 1, 1], [], []>} : vector<16x64xf32>, vector<64x128xf32>, vector<16x128xf32> -> vector<16x128xf32>
    %16 = arith.addf %10, %15 : vector<16x128xf32>
    %c0_17 = arith.constant 0 : index
    %c0_18 = arith.constant 0 : index
    %17 = vector.load %arg3[%c0_17, %c0_18] : memref<1x128xf32, #tpu.memory_space<vmem>>, vector<1x128xf32>
    %18 = vector.broadcast %17 : vector<1x128xf32> to vector<16x128xf32>
    %19 = arith.addf %16, %18 : vector<16x128xf32>
    %cst_19 = arith.constant 0.000000e+00 : f32
    %20 = vector.broadcast %cst_19 : f32 to vector<16x128xf32>
    %21 = arith.maximumf %19, %20 : vector<16x128xf32>
    %cst_20 = arith.constant 0.000000e+00 : f32
    %22 = vector.broadcast %cst_20 : f32 to vector<18x128xf32>
    %c0_21 = arith.constant 0 : index
    %c0_22 = arith.constant 0 : index
    %23 = vector.load %arg9[%c0_21, %c0_22] : memref<18x128xf32, #tpu.memory_space<vmem>>, vector<18x128xf32>
    tpu.vector_store %arg9[%c0_21, %c0_22], %22 {strides = array<i32>} : memref<18x128xf32, #tpu.memory_space<vmem>>, vector<18x128xf32>,
    %c1_23 = arith.constant 1 : index
    %c0_24 = arith.constant 0 : index
    %24 = vector.load %arg9[%c1_23, %c0_24] : memref<18x128xf32, #tpu.memory_space<vmem>>, vector<16x128xf32>
    tpu.vector_store %arg9[%c1_23, %c0_24], %21 {strides = array<i32>} : memref<18x128xf32, #tpu.memory_space<vmem>>, vector<16x128xf32>,
    %c0_25 = arith.constant 0 : index
    %c0_26 = arith.constant 0 : index
    %25 = vector.load %arg9[%c0_25, %c0_26] : memref<18x128xf32, #tpu.memory_space<vmem>>, vector<16x128xf32>
    %c0_27 = arith.constant 0 : index
    %c0_28 = arith.constant 0 : index
    %c0_29 = arith.constant 0 : index
    %26 = vector.load %arg4[%c0_27, %c0_28, %c0_29] : memref<3x128x256xf32, #tpu.memory_space<vmem>>, vector<1x128x256xf32>
    %27 = vector.shape_cast %26 : vector<1x128x256xf32> to vector<128x256xf32>
    %cst_30 = arith.constant dense<0.000000e+00> : vector<16x256xf32>
    %28 = tpu.matmul %25, %27, %cst_30 {dimension_numbers = #tpu.dot_dimension_numbers<[1], [0], [0], [1], [0, 0, 1, 1], [], []>} : vector<16x128xf32>, vector<128x256xf32>, vector<16x256xf32> -> vector<16x256xf32>
    %c1_31 = arith.constant 1 : index
    %c0_32 = arith.constant 0 : index
    %29 = vector.load %arg9[%c1_31, %c0_32] : memref<18x128xf32, #tpu.memory_space<vmem>>, vector<16x128xf32>
    %c1_33 = arith.constant 1 : index
    %c0_34 = arith.constant 0 : index
    %c0_35 = arith.constant 0 : index
    %30 = vector.load %arg4[%c1_33, %c0_34, %c0_35] : memref<3x128x256xf32, #tpu.memory_space<vmem>>, vector<1x128x256xf32>
    %31 = vector.shape_cast %30 : vector<1x128x256xf32> to vector<128x256xf32>
    %cst_36 = arith.constant dense<0.000000e+00> : vector<16x256xf32>
    %32 = tpu.matmul %29, %31, %cst_36 {dimension_numbers = #tpu.dot_dimension_numbers<[1], [0], [0], [1], [0, 0, 1, 1], [], []>} : vector<16x128xf32>, vector<128x256xf32>, vector<16x256xf32> -> vector<16x256xf32>
    %33 = arith.addf %28, %32 : vector<16x256xf32>
    %c2_37 = arith.constant 2 : index
    %c0_38 = arith.constant 0 : index
    %34 = vector.load %arg9[%c2_37, %c0_38] : memref<18x128xf32, #tpu.memory_space<vmem>>, vector<16x128xf32>
    %c2_39 = arith.constant 2 : index
    %c0_40 = arith.constant 0 : index
    %c0_41 = arith.constant 0 : index
    %35 = vector.load %arg4[%c2_39, %c0_40, %c0_41] : memref<3x128x256xf32, #tpu.memory_space<vmem>>, vector<1x128x256xf32>
    %36 = vector.shape_cast %35 : vector<1x128x256xf32> to vector<128x256xf32>
    %cst_42 = arith.constant dense<0.000000e+00> : vector<16x256xf32>
    %37 = tpu.matmul %34, %36, %cst_42 {dimension_numbers = #tpu.dot_dimension_numbers<[1], [0], [0], [1], [0, 0, 1, 1], [], []>} : vector<16x128xf32>, vector<128x256xf32>, vector<16x256xf32> -> vector<16x256xf32>
    %38 = arith.addf %33, %37 : vector<16x256xf32>
    %c0_43 = arith.constant 0 : index
    %c0_44 = arith.constant 0 : index
    %39 = vector.load %arg5[%c0_43, %c0_44] : memref<1x256xf32, #tpu.memory_space<vmem>>, vector<1x256xf32>
    %40 = vector.broadcast %39 : vector<1x256xf32> to vector<16x256xf32>
    %41 = arith.addf %38, %40 : vector<16x256xf32>
    %cst_45 = arith.constant 0.000000e+00 : f32
    %42 = vector.broadcast %cst_45 : f32 to vector<16x256xf32>
    %43 = arith.maximumf %41, %42 : vector<16x256xf32>
    %cst_46 = arith.constant 1.000000e+00 : f32
    %44 = vector.broadcast %cst_46 : f32 to vector<1x16xf32>
    %cst_47 = arith.constant dense<0.000000e+00> : vector<1x256xf32>
    %45 = tpu.matmul %44, %43, %cst_47 {dimension_numbers = #tpu.dot_dimension_numbers<[1], [0], [0], [1], [0, 0, 1, 1], [], []>} : vector<1x16xf32>, vector<16x256xf32>, vector<1x256xf32> -> vector<1x256xf32>
    %c0_48 = arith.constant 0 : index
    %c0_49 = arith.constant 0 : index
    %46 = vector.load %arg6[%c0_48, %c0_49] : memref<256x10xf32, #tpu.memory_space<vmem>>, vector<256x10xf32>
    %cst_50 = arith.constant dense<0.000000e+00> : vector<1x10xf32>
    %47 = tpu.matmul %45, %46, %cst_50 {dimension_numbers = #tpu.dot_dimension_numbers<[1], [0], [0], [1], [0, 0, 1, 1], [], []>} : vector<1x256xf32>, vector<256x10xf32>, vector<1x10xf32> -> vector<1x10xf32>
    %c0_51 = arith.constant 0 : index
    %c0_52 = arith.constant 0 : index
    %48 = vector.load %arg7[%c0_51, %c0_52] : memref<1x10xf32, #tpu.memory_space<vmem>>, vector<1x10xf32>
    %49 = arith.addf %47, %48 : vector<1x10xf32>
    %c0_53 = arith.constant 0 : index
    %c0_54 = arith.constant 0 : index
    %c0_55 = arith.constant 0 : index
    %50 = vector.load %arg8[%c0_53, %c0_54, %c0_55] : memref<1x1x10xf32, #tpu.memory_space<vmem>>, vector<1x1x10xf32>
    %51 = vector.shape_cast %50 : vector<1x1x10xf32> to vector<1x10xf32>
    %52 = vector.shape_cast %49 : vector<1x10xf32> to vector<1x1x10xf32>
    tpu.vector_store %arg8[%c0_53, %c0_54, %c0_55], %52 {strides = array<i32>} : memref<1x1x10xf32, #tpu.memory_space<vmem>>, vector<1x1x10xf32>,
    return
  }
  func.func @transform_0(%arg0: i32) -> (i32, i32, i32) {
    %c0_i32 = arith.constant 0 : i32
    %c0_i32_0 = arith.constant 0 : i32
    %c0_i32_1 = arith.constant 0 : i32
    return %arg0, %c0_i32, %c0_i32_0 : i32, i32, i32
  }
  func.func @transform_1(%arg0: i32) -> (i32, i32, i32) {
    %c0_i32 = arith.constant 0 : i32
    %c0_i32_0 = arith.constant 0 : i32
    %c0_i32_1 = arith.constant 0 : i32
    %c0_i32_2 = arith.constant 0 : i32
    return %c0_i32, %c0_i32_0, %c0_i32_1 : i32, i32, i32
  }
  func.func @transform_2(%arg0: i32) -> (i32, i32) {
    %c0_i32 = arith.constant 0 : i32
    %c0_i32_0 = arith.constant 0 : i32
    %c0_i32_1 = arith.constant 0 : i32
    return %c0_i32, %c0_i32_0 : i32, i32
  }
  func.func @transform_3(%arg0: i32) -> (i32, i32, i32) {
    %c0_i32 = arith.constant 0 : i32
    %c0_i32_0 = arith.constant 0 : i32
    %c0_i32_1 = arith.constant 0 : i32
    %c0_i32_2 = arith.constant 0 : i32
    return %c0_i32, %c0_i32_0, %c0_i32_1 : i32, i32, i32
  }
  func.func @transform_4(%arg0: i32) -> (i32, i32) {
    %c0_i32 = arith.constant 0 : i32
    %c0_i32_0 = arith.constant 0 : i32
    %c0_i32_1 = arith.constant 0 : i32
    return %c0_i32, %c0_i32_0 : i32, i32
  }
  func.func @transform_5(%arg0: i32) -> (i32, i32) {
    %c0_i32 = arith.constant 0 : i32
    %c0_i32_0 = arith.constant 0 : i32
    %c0_i32_1 = arith.constant 0 : i32
    return %c0_i32, %c0_i32_0 : i32, i32
  }
  func.func @transform_6(%arg0: i32) -> (i32, i32) {
    %c0_i32 = arith.constant 0 : i32
    %c0_i32_0 = arith.constant 0 : i32
    %c0_i32_1 = arith.constant 0 : i32
    return %c0_i32, %c0_i32_0 : i32, i32
  }
  func.func @transform_7(%arg0: i32) -> (i32, i32, i32) {
    %c0_i32 = arith.constant 0 : i32
    %c0_i32_0 = arith.constant 0 : i32
    %c0_i32_1 = arith.constant 0 : i32
    return %arg0, %c0_i32, %c0_i32_0 : i32, i32, i32
  }
}

</mosaic_0001>

<llo_original>
// kernel: model_wrapper_forward.1
$region0: #{model_wrapper_forward.1}
  #allocation0 [shape = 'u32[]', space=smem, size = 0x4, offset = 0x4, fixed_abs, tag = 'smem constant byte address 0x4 - core index']
  #allocation1 [shape = 'u32[72,128]{1,0:T(1,128)}', space=vmem, size = 0x9000, scoped, tag = 'internal scratch']
  #allocation2 [shape = 'f32[18,128]{1,0:T(8,128)}', space=vmem, size = 0x3000, scoped, tag = 'scratch operand']
  %s0 = inlined_call_operand.vmem [shape: f32[2,18,64], index: 0, kind: input, shape index: {}]
  %s1 = inlined_call_operand.vmem [shape: f32[3,64,128], index: 1, kind: input, shape index: {}]
  %s2 = inlined_call_operand.vmem [shape: f32[1,128], index: 2, kind: input, shape index: {}]
  %s3 = inlined_call_operand.hbm [shape: f32[3,128,256], index: 3, kind: input, shape index: {}]
  %s4 = inlined_call_operand.vmem [shape: f32[1,256], index: 4, kind: input, shape index: {}]
  %s5 = inlined_call_operand.vmem [shape: f32[256,10], index: 5, kind: input, shape index: {}]
  %s6 = inlined_call_operand.vmem [shape: f32[1,10], index: 6, kind: input, shape index: {}]
  %s7 = inlined_call_operand.hbm [shape: f32[2,1,10], index: 7, kind: output, shape index: {}]
  %s8 = sld [smem:[#allocation0]]
  $region65: #{model_wrapper_forward.1} parent=0
    _
  %s10 = ssub.s32 1, %s8
  %s11 = scalar_select 0, %s10, %s8
  $region1: #{model_wrapper_forward.1} parent=0
    #allocation3 [shape = 'u8[393216]{0}', space=vmem, size = 0x60000, scoped, tag = 'input window, operand 3, single buffered']
    #allocation4 [shape = 's32[2]{0}', space=sflag, size = 0x8, scoped, tag = 'scoped memory for model_wrapper_forward.1']
    #allocation5 [shape = 's32[2]{0}', space=sflag, size = 0x8, scoped, tag = 'scoped memory for model_wrapper_forward.1']
    #allocation6 [shape = 'u8[1024]{0}', space=vmem, size = 0x400, scoped, tag = 'output window, operand 0']
    %12 = vsyncpa [#allocation4], 0
    %13 = vsyncpa [#allocation5], 0
    %s14 = scalar_lea.sflag [#allocation5], 1
    %15 = vsyncpa %s14, 0
    loop: start=0, step=1, limit=4
    $region2: #{model_wrapper_forward.1} parent=1 // loop_pre_header
      _
    $region3: #{model_wrapper_forward.1} parent=1 // loop_header
      %s17 = sphi 0, %s21
      %p18 = scmp.ge.s32.totalorder %s17, 4
      %s27 = sphi 0, %s29
      %s30 = sphi 0, %s27
      %s31 = sphi 0, %s30
      %s47 = sphi 0, %s31
      %s51 = sphi 0, %s51
      %s53 = sphi 0, %s51
      %s54 = sphi 0, %s53
      %s68 = sphi 0, %s54
      %s72 = sphi 0, %s72
      %s74 = sphi 0, %s72
      %s75 = sphi 0, %s74
      %s89 = sphi 0, %s75
      %s93 = sphi 0, %s93
      %s95 = sphi 0, %s93
      %s96 = sphi 0, %s95
      %s110 = sphi 0, %s96
      %s114 = sphi 0, %s114
      %s116 = sphi 0, %s114
      %s117 = sphi 0, %s116
      %s131 = sphi 0, %s117
      %s135 = sphi 0, %s135
      %s137 = sphi 0, %s135
      %s138 = sphi 0, %s137
      %s152 = sphi 0, %s138
      %s156 = sphi 0, %s156
      %s158 = sphi 0, %s156
      %s159 = sphi 0, %s158
      %s173 = sphi 0, %s159
      %s179 = sphi 0, %s181
      %s182 = sphi 0, %s179
      %s183 = sphi 0, %s182
      %s199 = sphi 0, %s183
    $region4: #{model_wrapper_forward.1} parent=1 // loop_header_branch
      %20 = sbr.rel (%p18) target = $region8
    $region5: #{model_wrapper_forward.1} parent=1 // loop_body
      %s22 = ssub.s32 %s17, 1
      %s23 = ssub.s32 %s17, 2
      %s24 = sadd.s32 %s17, 1
      %s25 = ssub.s32 %s17, %s24
      %p26 = scmp.eq.s32.totalorder %s25, 0
      %s28 = sadd.s32 %s27, 1
      %s29 = scalar_select %p26, %s27, %s28
      %p32 = pneg %p26
      %p33 = scmp.eq.s32.totalorder %s17, 1
      %p34 = por %p32, %p33
      %p35 = scmp.ne.s32.totalorder %s27, %s30
      %p36 = scmp.eq.s32.totalorder %s17, 0
      %p37 = por %p35, %p36
      %p38 = scmp.ne.s32.totalorder %s27, %s30
      %p39 = scmp.eq.s32.totalorder %s22, 1
      %p40 = por %p38, %p39
      %p41 = scmp.ne.s32.totalorder %s30, %s31
      %p42 = scmp.eq.s32.totalorder %s22, 0
      %p43 = por %p41, %p42
      %p44 = scmp.ne.s32.totalorder %s30, %s31
      %p45 = scmp.eq.s32.totalorder %s23, 1
      %p46 = por %p44, %p45
      %p48 = scmp.ne.s32.totalorder %s31, %s47
      %p49 = scmp.eq.s32.totalorder %s23, 0
      %p50 = por %p48, %p49
      %s52 = sadd.s32 %s51, 1
      %p55 = scmp.eq.s32.totalorder %s17, 1
      %p56 = scmp.ne.s32.totalorder %s51, %s53
      %p57 = scmp.eq.s32.totalorder %s17, 0
      %p58 = por %p56, %p57
      %p59 = scmp.ne.s32.totalorder %s51, %s53
      %p60 = scmp.eq.s32.totalorder %s22, 1
      %p61 = por %p59, %p60
      %p62 = scmp.ne.s32.totalorder %s53, %s54
      %p63 = scmp.eq.s32.totalorder %s22, 0
      %p64 = por %p62, %p63
      %p65 = scmp.ne.s32.totalorder %s53, %s54
      %p66 = scmp.eq.s32.totalorder %s23, 1
      %p67 = por %p65, %p66
      %p69 = scmp.ne.s32.totalorder %s54, %s68
      %p70 = scmp.eq.s32.totalorder %s23, 0
      %p71 = por %p69, %p70
      %s73 = sadd.s32 %s72, 1
      %p76 = scmp.eq.s32.totalorder %s17, 1
      %p77 = scmp.ne.s32.totalorder %s72, %s74
      %p78 = scmp.eq.s32.totalorder %s17, 0
      %p79 = por %p77, %p78
      %p80 = scmp.ne.s32.totalorder %s72, %s74
      %p81 = scmp.eq.s32.totalorder %s22, 1
      %p82 = por %p80, %p81
      %p83 = scmp.ne.s32.totalorder %s74, %s75
      %p84 = scmp.eq.s32.totalorder %s22, 0
      %p85 = por %p83, %p84
      %p86 = scmp.ne.s32.totalorder %s74, %s75
      %p87 = scmp.eq.s32.totalorder %s23, 1
      %p88 = por %p86, %p87
      %p90 = scmp.ne.s32.totalorder %s75, %s89
      %p91 = scmp.eq.s32.totalorder %s23, 0
      %p92 = por %p90, %p91
      %s94 = sadd.s32 %s93, 1
      %p97 = scmp.eq.s32.totalorder %s17, 1
      %p98 = scmp.ne.s32.totalorder %s93, %s95
      %p99 = scmp.eq.s32.totalorder %s17, 0
      %p100 = por %p98, %p99
      %p101 = scmp.ne.s32.totalorder %s93, %s95
      %p102 = scmp.eq.s32.totalorder %s22, 1
      %p103 = por %p101, %p102
      %p104 = scmp.ne.s32.totalorder %s95, %s96
      %p105 = scmp.eq.s32.totalorder %s22, 0
      %p106 = por %p104, %p105
      %p107 = scmp.ne.s32.totalorder %s95, %s96
      %p108 = scmp.eq.s32.totalorder %s23, 1
      %p109 = por %p107, %p108
      %p111 = scmp.ne.s32.totalorder %s96, %s110
      %p112 = scmp.eq.s32.totalorder %s23, 0
      %p113 = por %p111, %p112
      %s115 = sadd.s32 %s114, 1
      %p118 = scmp.eq.s32.totalorder %s17, 1
      %p119 = scmp.ne.s32.totalorder %s114, %s116
      %p120 = scmp.eq.s32.totalorder %s17, 0
      %p121 = por %p119, %p120
      %p122 = scmp.ne.s32.totalorder %s114, %s116
      %p123 = scmp.eq.s32.totalorder %s22, 1
      %p124 = por %p122, %p123
      %p125 = scmp.ne.s32.totalorder %s116, %s117
      %p126 = scmp.eq.s32.totalorder %s22, 0
      %p127 = por %p125, %p126
      %p128 = scmp.ne.s32.totalorder %s116, %s117
      %p129 = scmp.eq.s32.totalorder %s23, 1
      %p130 = por %p128, %p129
      %p132 = scmp.ne.s32.totalorder %s117, %s131
      %p133 = scmp.eq.s32.totalorder %s23, 0
      %p134 = por %p132, %p133
      %s136 = sadd.s32 %s135, 1
      %p139 = scmp.eq.s32.totalorder %s17, 1
      %p140 = scmp.ne.s32.totalorder %s135, %s137
      %p141 = scmp.eq.s32.totalorder %s17, 0
      %p142 = por %p140, %p141
      %p143 = scmp.ne.s32.totalorder %s135, %s137
      %p144 = scmp.eq.s32.totalorder %s22, 1
      %p145 = por %p143, %p144
      %p146 = scmp.ne.s32.totalorder %s137, %s138
      %p147 = scmp.eq.s32.totalorder %s22, 0
      %p148 = por %p146, %p147
      %p149 = scmp.ne.s32.totalorder %s137, %s138
      %p150 = scmp.eq.s32.totalorder %s23, 1
      %p151 = por %p149, %p150
      %p153 = scmp.ne.s32.totalorder %s138, %s152
      %p154 = scmp.eq.s32.totalorder %s23, 0
      %p155 = por %p153, %p154
      %s157 = sadd.s32 %s156, 1
      %p160 = scmp.eq.s32.totalorder %s17, 1
      %p161 = scmp.ne.s32.totalorder %s156, %s158
      %p162 = scmp.eq.s32.totalorder %s17, 0
      %p163 = por %p161, %p162
      %p164 = scmp.ne.s32.totalorder %s156, %s158
      %p165 = scmp.eq.s32.totalorder %s22, 1
      %p166 = por %p164, %p165
      %p167 = scmp.ne.s32.totalorder %s158, %s159
      %p168 = scmp.eq.s32.totalorder %s22, 0
      %p169 = por %p167, %p168
      %p170 = scmp.ne.s32.totalorder %s158, %s159
      %p171 = scmp.eq.s32.totalorder %s23, 1
      %p172 = por %p170, %p171
      %p174 = scmp.ne.s32.totalorder %s159, %s173
      %p175 = scmp.eq.s32.totalorder %s23, 0
      %p176 = por %p174, %p175
      %s177 = ssub.s32 %s17, %s24
      %p178 = scmp.eq.s32.totalorder %s177, 0
      %s180 = sadd.s32 %s179, 1
      %s181 = scalar_select %p178, %s179, %s180
      %p184 = pneg %p178
      %p185 = scmp.eq.s32.totalorder %s17, 1
      %p186 = por %p184, %p185
      %p187 = scmp.ne.s32.totalorder %s179, %s182
      %p188 = scmp.eq.s32.totalorder %s17, 0
      %p189 = por %p187, %p188
      %p190 = scmp.ne.s32.totalorder %s179, %s182
      %p191 = scmp.eq.s32.totalorder %s22, 1
      %p192 = por %p190, %p191
      %p193 = scmp.ne.s32.totalorder %s182, %s183
      %p194 = scmp.eq.s32.totalorder %s22, 0
      %p195 = por %p193, %p194
      %p196 = scmp.ne.s32.totalorder %s182, %s183
      %p197 = scmp.eq.s32.totalorder %s23, 1
      %p198 = por %p196, %p197
      %p200 = scmp.ne.s32.totalorder %s183, %s199
      %p201 = scmp.eq.s32.totalorder %s23, 0
      %p202 = por %p200, %p201
      %p203 = scmp.le.s32.totalorder 1, %s17
      %p204 = scmp.lt.s32.totalorder %s17, 3
      %p205 = pnand %p203, %p204
      %p206 = pneg %p205
      // Predicated region
      $region9: #{model_wrapper_forward.1} parent=5 // pred_check
        _
      $region10: #{model_wrapper_forward.1} parent=5 // pred_check_branch
        %208 = sbr.rel (%p205) target = $region12
      $region11: #{model_wrapper_forward.1} parent=5 // pred_region
        %s209 = ssub.s32 %s17, 1
        // Predicated region
        $region13: #{model_wrapper_forward.1} parent=11 // pred_check
          %p210 = pneg %p64
        $region14: #{model_wrapper_forward.1} parent=11 // pred_check_branch
          %212 = sbr.rel (%p210) target = $region16
        $region15: #{model_wrapper_forward.1} parent=11 // pred_region
          _
        $region16: #{model_wrapper_forward.1} parent=11 // pred_fallthru
          _
        // Predicated region
        $region17: #{model_wrapper_forward.1} parent=11 // pred_check
          %p213 = pneg %p85
        $region18: #{model_wrapper_forward.1} parent=11 // pred_check_branch
          %215 = sbr.rel (%p213) target = $region20
        $region19: #{model_wrapper_forward.1} parent=11 // pred_region
          _
        $region20: #{model_wrapper_forward.1} parent=11 // pred_fallthru
          _
        // Predicated region
        $region21: #{model_wrapper_forward.1} parent=11 // pred_check
          %p216 = pneg %p106
        $region22: #{model_wrapper_forward.1} parent=11 // pred_check_branch
          %218 = sbr.rel (%p216) target = $region24
        $region23: #{model_wrapper_forward.1} parent=11 // pred_region
          %220 = vsyncadd [#allocation4], 0
          %s221 = sshll.u32 %s3, 4
          %s222 = int_to_ptr.hbm [resolvable:$true] %s221
          %s223 = sshll.u32 [#allocation3], 4
          %s224 = int_to_ptr.vmem [resolvable:$true] %s223
          %229 = dma.hbm_to_vmem [thread:$0]  %s222, 12288, %s224, [#allocation4], 256, 256, 16
        $region24: #{model_wrapper_forward.1} parent=11 // pred_fallthru
          _
        // Predicated region
        $region25: #{model_wrapper_forward.1} parent=11 // pred_check
          %p230 = pneg %p127
        $region26: #{model_wrapper_forward.1} parent=11 // pred_check_branch
          %232 = sbr.rel (%p230) target = $region28
        $region27: #{model_wrapper_forward.1} parent=11 // pred_region
          _
        $region28: #{model_wrapper_forward.1} parent=11 // pred_fallthru
          _
        // Predicated region
        $region29: #{model_wrapper_forward.1} parent=11 // pred_check
          %p233 = pneg %p148
        $region30: #{model_wrapper_forward.1} parent=11 // pred_check_branch
          %235 = sbr.rel (%p233) target = $region32
        $region31: #{model_wrapper_forward.1} parent=11 // pred_region
          _
        $region32: #{model_wrapper_forward.1} parent=11 // pred_fallthru
          _
        // Predicated region
        $region33: #{model_wrapper_forward.1} parent=11 // pred_check
          %p236 = pneg %p169
        $region34: #{model_wrapper_forward.1} parent=11 // pred_check_branch
          %238 = sbr.rel (%p236) target = $region36
        $region35: #{model_wrapper_forward.1} parent=11 // pred_region
          _
        $region36: #{model_wrapper_forward.1} parent=11 // pred_fallthru
          _
      $region12: #{model_wrapper_forward.1} parent=5 // pred_fallthru
        _
      %p239 = scmp.lt.s32.totalorder %s17, 2
      // Predicated region
      $region37: #{model_wrapper_forward.1} parent=5 // pred_check
        %p240 = pneg %p239
      $region38: #{model_wrapper_forward.1} parent=5 // pred_check_branch
        %242 = sbr.rel (%p240) target = $region40
      $region39: #{model_wrapper_forward.1} parent=5 // pred_region
        // Predicated region
        $region41: #{model_wrapper_forward.1} parent=39 // pred_check
          %p243 = pneg %p37
        $region42: #{model_wrapper_forward.1} parent=39 // pred_check_branch
          %245 = sbr.rel (%p243) target = $region44
        $region43: #{model_wrapper_forward.1} parent=39 // pred_region
          %p246 = scmp.lt.s32.totalorder %s17, 1
          %s247 = scalar_select %p246, %s17, 1
          %s248 = smul.addr %s247, 3
          %s249 = smul.addr %s248, 8
          %s250 = scalar_lea.vmem %s0, %s249
        $region44: #{model_wrapper_forward.1} parent=39 // pred_fallthru
          _
      $region40: #{model_wrapper_forward.1} parent=5 // pred_fallthru
        _
      %p251 = scmp.le.s32.totalorder 1, %s17
      %p252 = scmp.lt.s32.totalorder %s17, 3
      %p253 = pnand %p251, %p252
      %p254 = pneg %p253
      // Predicated region
      $region45: #{model_wrapper_forward.1} parent=5 // pred_check
        _
      $region46: #{model_wrapper_forward.1} parent=5 // pred_check_branch
        %256 = sbr.rel (%p253) target = $region48
      $region47: #{model_wrapper_forward.1} parent=5 // pred_region
        %s257 = ssub.s32 %s17, 1
        // Predicated region
        $region49: #{model_wrapper_forward.1} parent=47 // pred_check
          %p258 = pneg %p106
        $region50: #{model_wrapper_forward.1} parent=47 // pred_check_branch
          %260 = sbr.rel (%p258) target = $region52
        $region51: #{model_wrapper_forward.1} parent=47 // pred_region
          %262 = dma.done [#allocation4], 12288
        $region52: #{model_wrapper_forward.1} parent=47 // pred_fallthru
          _
        %p263 = scmp.lt.s32.totalorder %s22, 1
        %s264 = scalar_select %p263, %s22, 1
        %s265 = smul.addr %s264, 3
        %s266 = smul.addr %s265, 8
        %s267 = scalar_lea.vmem %s0, %s266
        %p268 = pneg %p43
        %p269 = pneg %p40
        %p270 = pneg %p64
        %p271 = pneg %p61
        %p272 = pneg %p85
        %p273 = pneg %p82
        %p274 = pneg %p106
        %p275 = pneg %p103
        %p276 = pneg %p127
        %p277 = pneg %p124
        %p278 = pneg %p148
        %p279 = pneg %p145
        %p280 = pneg %p169
        %p281 = pneg %p166
        %p282 = pneg %p195
        %p283 = pneg %p192
        %s284 = sand.u32 %s182, 1
        %s285 = scalar_lea.sflag [#allocation5], %s284
        %s286 = sand.u32 %s182, 1
        %s287 = scalar_lea.vmem [#allocation6], %s286
        %p288 = scmp.lt.s32.totalorder %s22, 1
        %s289 = scalar_select %p288, %s22, 1
        %s290 = smul.addr %s289, 3
        %s291 = smul.addr %s290, 8
        %s292 = scalar_lea.vmem %s0, %s291
        %v293 = vld [vmem:[%s292] sm:$0xff]
        %v294 = vld [vmem:[%s292 + $0x8] sm:$0xff]
        %v295 = vld [vmem:[%s1] sm:$0xff]
        %v296 = vld [vmem:[%s1 + $0x8] sm:$0xff]
        %v297 = vld [vmem:[%s1 + $0x10] sm:$0xff]
        %v298 = vld [vmem:[%s1 + $0x18] sm:$0xff]
        %v299 = vld [vmem:[%s1 + $0x20] sm:$0xff]
        %v300 = vld [vmem:[%s1 + $0x28] sm:$0xff]
        %v301 = vld [vmem:[%s1 + $0x30] sm:$0xff]
        %v302 = vld [vmem:[%s1 + $0x38] sm:$0xff]
        %v303 = vld [vmem:[%s292 + $0x1] sm:$0xff]
        %v304 = vld [vmem:[%s292 + $0x9] sm:$0xff]
        %s305 = scalar_lea.vmem %s1, 64
        %v306 = vld [vmem:[%s305] sm:$0xff]
        %v307 = vld [vmem:[%s305 + $0x8] sm:$0xff]
        %v308 = vld [vmem:[%s305 + $0x10] sm:$0xff]
        %v309 = vld [vmem:[%s305 + $0x18] sm:$0xff]
        %v310 = vld [vmem:[%s305 + $0x20] sm:$0xff]
        %v311 = vld [vmem:[%s305 + $0x28] sm:$0xff]
        %v312 = vld [vmem:[%s305 + $0x30] sm:$0xff]
        %v313 = vld [vmem:[%s305 + $0x38] sm:$0xff]
        %vm314 = vcmask 523264
        %v316 = vsel %vm314, %v303, 0
        %v319 = vsel %vm314, %v304, 0
        %321 = vmatpush.msra.mxu0 0.0
        %322 = vmatpush.msra.mxu0 0.0
        %323 = vmatpush.msra.mxu0 0.0
        %324 = vmatpush.msra.mxu0 0.0
        %325 = vmatpush.msra.mxu0 0.0
        %326 = vmatpush.msra.mxu0 0.0
        %327 = vmatpush.msra.mxu0 0.0
        %328 = vmatpush.msra.mxu0 0.0
        %329 = vmatpush.msra.mxu0 %v313
        %330 = vmatpush.msra.mxu0 %v312
        %331 = vmatpush.msra.mxu0 %v311
        %332 = vmatpush.msra.mxu0 %v310
        %333 = vmatpush.msra.mxu0 %v309
        %334 = vmatpush.msra.mxu0 %v308
        %335 = vmatpush.msra.mxu0 %v307
        %336 = vmatpush.msra.mxu0 %v306
        %337 = vmatmul.f32.gmra.mxu0 %v316
        %v338 = vpop.f32.mrf.mxu0
        %v339 = vadd.f32 0.0, %v338
        %340 = vmatmul.f32.gmra.mxu0 %v319
        %v341 = vpop.f32.mrf.mxu0
        %v342 = vadd.f32 0.0, %v341
        %343 = vdwg.mxu0
        %v345 = vsel %vm314, %v293, 0
        %v348 = vsel %vm314, %v294, 0
        %350 = vmatpush.msra.mxu0 0.0
        %351 = vmatpush.msra.mxu0 0.0
        %352 = vmatpush.msra.mxu0 0.0
        %353 = vmatpush.msra.mxu0 0.0
        %354 = vmatpush.msra.mxu0 0.0
        %355 = vmatpush.msra.mxu0 0.0
        %356 = vmatpush.msra.mxu0 0.0
        %357 = vmatpush.msra.mxu0 0.0
        %358 = vmatpush.msra.mxu0 %v302
        %359 = vmatpush.msra.mxu0 %v301
        %360 = vmatpush.msra.mxu0 %v300
        %361 = vmatpush.msra.mxu0 %v299
        %362 = vmatpush.msra.mxu0 %v298
        %363 = vmatpush.msra.mxu0 %v297
        %364 = vmatpush.msra.mxu0 %v296
        %365 = vmatpush.msra.mxu0 %v295
        %366 = vmatmul.f32.gmra.mxu0 %v345
        %v367 = vpop.f32.mrf.mxu0
        %v368 = vadd.f32 %v339, %v367
        %369 = vmatmul.f32.gmra.mxu0 %v348
        %v370 = vpop.f32.mrf.mxu0
        %v371 = vadd.f32 %v342, %v370
        %372 = vdwg.mxu0
        %v373 = vld [vmem:[%s292 + $0x2] sm:$0xff]
        %v374 = vld [vmem:[%s292 + $0xa] sm:$0xff]
        %s375 = scalar_lea.vmem %s1, 128
        %v376 = vld [vmem:[%s375] sm:$0xff]
        %v377 = vld [vmem:[%s375 + $0x8] sm:$0xff]
        %v378 = vld [vmem:[%s375 + $0x10] sm:$0xff]
        %v379 = vld [vmem:[%s375 + $0x18] sm:$0xff]
        %v380 = vld [vmem:[%s375 + $0x20] sm:$0xff]
        %v381 = vld [vmem:[%s375 + $0x28] sm:$0xff]
        %v382 = vld [vmem:[%s375 + $0x30] sm:$0xff]
        %v383 = vld [vmem:[%s375 + $0x38] sm:$0xff]
        %v385 = vsel %vm314, %v373, 0
        %v388 = vsel %vm314, %v374, 0
        %390 = vmatpush.msra.mxu0 0.0
        %391 = vmatpush.msra.mxu0 0.0
        %392 = vmatpush.msra.mxu0 0.0
        %393 = vmatpush.msra.mxu0 0.0
        %394 = vmatpush.msra.mxu0 0.0
        %395 = vmatpush.msra.mxu0 0.0
        %396 = vmatpush.msra.mxu0 0.0
        %397 = vmatpush.msra.mxu0 0.0
        %398 = vmatpush.msra.mxu0 %v383
        %399 = vmatpush.msra.mxu0 %v382
        %400 = vmatpush.msra.mxu0 %v381
        %401 = vmatpush.msra.mxu0 %v380
        %402 = vmatpush.msra.mxu0 %v379
        %403 = vmatpush.msra.mxu0 %v378
        %404 = vmatpush.msra.mxu0 %v377
        %405 = vmatpush.msra.mxu0 %v376
        %406 = vmatmul.f32.gmra.mxu0 %v385
        %v407 = vpop.f32.mrf.mxu0
        %v408 = vadd.f32 0.0, %v407
        %409 = vmatmul.f32.gmra.mxu0 %v388
        %v410 = vpop.f32.mrf.mxu0
        %v411 = vadd.f32 0.0, %v410
        %412 = vdwg.mxu0
        %v413 = vadd.f32 %v368, %v408
        %v414 = vadd.f32 %v371, %v411
        %v415 = vld [vmem:[%s2] sm:$0x1]
        %v417 = vperm.slane %v415, 0
        %v419 = vadd.f32 %v413, %v417
        %v420 = vadd.f32 %v414, %v417
        %v421 = vmax.f32 %v419, 0.0
        %v422 = vmax.f32 %v420, 0.0
        %423 = vst [vmem:[#allocation2] sm:$0xff] 0.0
        %424 = vst [vmem:[#allocation2 + $0x8] sm:$0xff] 0.0
        %425 = vst [vmem:[#allocation2 + $0x10] sm:$0x3] 0.0
        %426 = vst [vmem:[#allocation2 + $0x1] sm:$0xff] %v421
        %427 = vst [vmem:[#allocation2 + $0x9] sm:$0xff] %v422
        %v428 = vld [vmem:[#allocation2] sm:$0xff]
        %v429 = vld [vmem:[#allocation2 + $0x8] sm:$0xff]
        %v430 = vld [vmem:[#allocation3] sm:$0xff]
        %v431 = vld [vmem:[#allocation3 + $0x8] sm:$0xff]
        %v432 = vld [vmem:[#allocation3 + $0x10] sm:$0xff]
        %v433 = vld [vmem:[#allocation3 + $0x18] sm:$0xff]
        %v434 = vld [vmem:[#allocation3 + $0x20] sm:$0xff]
        %v435 = vld [vmem:[#allocation3 + $0x28] sm:$0xff]
        %v436 = vld [vmem:[#allocation3 + $0x30] sm:$0xff]
        %v437 = vld [vmem:[#allocation3 + $0x38] sm:$0xff]
        %v438 = vld [vmem:[#allocation3 + $0x40] sm:$0xff]
        %v439 = vld [vmem:[#allocation3 + $0x48] sm:$0xff]
        %v440 = vld [vmem:[#allocation3 + $0x50] sm:$0xff]
        %v441 = vld [vmem:[#allocation3 + $0x58] sm:$0xff]
        %v442 = vld [vmem:[#allocation3 + $0x60] sm:$0xff]
        %v443 = vld [vmem:[#allocation3 + $0x68] sm:$0xff]
        %v444 = vld [vmem:[#allocation3 + $0x70] sm:$0xff]
        %v445 = vld [vmem:[#allocation3 + $0x78] sm:$0xff]
        %v446 = vld [vmem:[#allocation3 + $0x80] sm:$0xff]
        %v447 = vld [vmem:[#allocation3 + $0x88] sm:$0xff]
        %v448 = vld [vmem:[#allocation3 + $0x90] sm:$0xff]
        %v449 = vld [vmem:[#allocation3 + $0x98] sm:$0xff]
        %v450 = vld [vmem:[#allocation3 + $0xa0] sm:$0xff]
        %v451 = vld [vmem:[#allocation3 + $0xa8] sm:$0xff]
        %v452 = vld [vmem:[#allocation3 + $0xb0] sm:$0xff]
        %v453 = vld [vmem:[#allocation3 + $0xb8] sm:$0xff]
        %v454 = vld [vmem:[#allocation3 + $0xc0] sm:$0xff]
        %v455 = vld [vmem:[#allocation3 + $0xc8] sm:$0xff]
        %v456 = vld [vmem:[#allocation3 + $0xd0] sm:$0xff]
        %v457 = vld [vmem:[#allocation3 + $0xd8] sm:$0xff]
        %v458 = vld [vmem:[#allocation3 + $0xe0] sm:$0xff]
        %v459 = vld [vmem:[#allocation3 + $0xe8] sm:$0xff]
        %v460 = vld [vmem:[#allocation3 + $0xf0] sm:$0xff]
        %v461 = vld [vmem:[#allocation3 + $0xf8] sm:$0xff]
        %v462 = vld [vmem:[#allocation2 + $0x1] sm:$0xff]
        %v463 = vld [vmem:[#allocation2 + $0x9] sm:$0xff]
        %s464 = scalar_lea.vmem [#allocation3], 256
        %v465 = vld [vmem:[%s464] sm:$0xff]
        %v466 = vld [vmem:[%s464 + $0x8] sm:$0xff]
        %v467 = vld [vmem:[%s464 + $0x10] sm:$0xff]
        %v468 = vld [vmem:[%s464 + $0x18] sm:$0xff]
        %v469 = vld [vmem:[%s464 + $0x20] sm:$0xff]
        %v470 = vld [vmem:[%s464 + $0x28] sm:$0xff]
        %v471 = vld [vmem:[%s464 + $0x30] sm:$0xff]
        %v472 = vld [vmem:[%s464 + $0x38] sm:$0xff]
        %v473 = vld [vmem:[%s464 + $0x40] sm:$0xff]
        %v474 = vld [vmem:[%s464 + $0x48] sm:$0xff]
        %v475 = vld [vmem:[%s464 + $0x50] sm:$0xff]
        %v476 = vld [vmem:[%s464 + $0x58] sm:$0xff]
        %v477 = vld [vmem:[%s464 + $0x60] sm:$0xff]
        %v478 = vld [vmem:[%s464 + $0x68] sm:$0xff]
        %v479 = vld [vmem:[%s464 + $0x70] sm:$0xff]
        %v480 = vld [vmem:[%s464 + $0x78] sm:$0xff]
        %v481 = vld [vmem:[%s464 + $0x80] sm:$0xff]
        %v482 = vld [vmem:[%s464 + $0x88] sm:$0xff]
        %v483 = vld [vmem:[%s464 + $0x90] sm:$0xff]
        %v484 = vld [vmem:[%s464 + $0x98] sm:$0xff]
        %v485 = vld [vmem:[%s464 + $0xa0] sm:$0xff]
        %v486 = vld [vmem:[%s464 + $0xa8] sm:$0xff]
        %v487 = vld [vmem:[%s464 + $0xb0] sm:$0xff]
        %v488 = vld [vmem:[%s464 + $0xb8] sm:$0xff]
        %v489 = vld [vmem:[%s464 + $0xc0] sm:$0xff]
        %v490 = vld [vmem:[%s464 + $0xc8] sm:$0xff]
        %v491 = vld [vmem:[%s464 + $0xd0] sm:$0xff]
        %v492 = vld [vmem:[%s464 + $0xd8] sm:$0xff]
        %v493 = vld [vmem:[%s464 + $0xe0] sm:$0xff]
        %v494 = vld [vmem:[%s464 + $0xe8] sm:$0xff]
        %v495 = vld [vmem:[%s464 + $0xf0] sm:$0xff]
        %v496 = vld [vmem:[%s464 + $0xf8] sm:$0xff]
        %497 = vmatpush.msra.mxu0 %v495
        %498 = vmatpush.msra.mxu0 %v493
        %499 = vmatpush.msra.mxu0 %v491
        %500 = vmatpush.msra.mxu0 %v489
        %501 = vmatpush.msra.mxu0 %v487
        %502 = vmatpush.msra.mxu0 %v485
        %503 = vmatpush.msra.mxu0 %v483
        %504 = vmatpush.msra.mxu0 %v481
        %505 = vmatpush.msra.mxu0 %v479
        %506 = vmatpush.msra.mxu0 %v477
        %507 = vmatpush.msra.mxu0 %v475
        %508 = vmatpush.msra.mxu0 %v473
        %509 = vmatpush.msra.mxu0 %v471
        %510 = vmatpush.msra.mxu0 %v469
        %511 = vmatpush.msra.mxu0 %v467
        %512 = vmatpush.msra.mxu0 %v465
        %513 = vmatmul.f32.gmra.mxu0 %v462
        %v514 = vpop.f32.mrf.mxu0
        %v515 = vadd.f32 0.0, %v514
        %516 = vmatmul.f32.gmra.mxu0 %v463
        %v517 = vpop.f32.mrf.mxu0
        %v518 = vadd.f32 0.0, %v517
        %519 = vdwg.mxu0
        %520 = vmatpush.msra.mxu0 %v496
        %521 = vmatpush.msra.mxu0 %v494
        %522 = vmatpush.msra.mxu0 %v492
        %523 = vmatpush.msra.mxu0 %v490
        %524 = vmatpush.msra.mxu0 %v488
        %525 = vmatpush.msra.mxu0 %v486
        %526 = vmatpush.msra.mxu0 %v484
        %527 = vmatpush.msra.mxu0 %v482
        %528 = vmatpush.msra.mxu0 %v480
        %529 = vmatpush.msra.mxu0 %v478
        %530 = vmatpush.msra.mxu0 %v476
        %531 = vmatpush.msra.mxu0 %v474
        %532 = vmatpush.msra.mxu0 %v472
        %533 = vmatpush.msra.mxu0 %v470
        %534 = vmatpush.msra.mxu0 %v468
        %535 = vmatpush.msra.mxu0 %v466
        %536 = vmatmul.f32.gmra.mxu0 %v462
        %v537 = vpop.f32.mrf.mxu0
        %v538 = vadd.f32 0.0, %v537
        %539 = vmatmul.f32.gmra.mxu0 %v463
        %v540 = vpop.f32.mrf.mxu0
        %v541 = vadd.f32 0.0, %v540
        %542 = vdwg.mxu0
        %543 = vmatpush.msra.mxu0 %v460
        %544 = vmatpush.msra.mxu0 %v458
        %545 = vmatpush.msra.mxu0 %v456
        %546 = vmatpush.msra.mxu0 %v454
        %547 = vmatpush.msra.mxu0 %v452
        %548 = vmatpush.msra.mxu0 %v450
        %549 = vmatpush.msra.mxu0 %v448
        %550 = vmatpush.msra.mxu0 %v446
        %551 = vmatpush.msra.mxu0 %v444
        %552 = vmatpush.msra.mxu0 %v442
        %553 = vmatpush.msra.mxu0 %v440
        %554 = vmatpush.msra.mxu0 %v438
        %555 = vmatpush.msra.mxu0 %v436
        %556 = vmatpush.msra.mxu0 %v434
        %557 = vmatpush.msra.mxu0 %v432
        %558 = vmatpush.msra.mxu0 %v430
        %559 = vmatmul.f32.gmra.mxu0 %v428
        %v560 = vpop.f32.mrf.mxu0
        %v561 = vadd.f32 %v515, %v560
        %562 = vmatmul.f32.gmra.mxu0 %v429
        %v563 = vpop.f32.mrf.mxu0
        %v564 = vadd.f32 %v518, %v563
        %565 = vdwg.mxu0
        %566 = vmatpush.msra.mxu0 %v461
        %567 = vmatpush.msra.mxu0 %v459
        %568 = vmatpush.msra.mxu0 %v457
        %569 = vmatpush.msra.mxu0 %v455
        %570 = vmatpush.msra.mxu0 %v453
        %571 = vmatpush.msra.mxu0 %v451
        %572 = vmatpush.msra.mxu0 %v449
        %573 = vmatpush.msra.mxu0 %v447
        %574 = vmatpush.msra.mxu0 %v445
        %575 = vmatpush.msra.mxu0 %v443
        %576 = vmatpush.msra.mxu0 %v441
        %577 = vmatpush.msra.mxu0 %v439
        %578 = vmatpush.msra.mxu0 %v437
        %579 = vmatpush.msra.mxu0 %v435
        %580 = vmatpush.msra.mxu0 %v433
        %581 = vmatpush.msra.mxu0 %v431
        %582 = vmatmul.f32.gmra.mxu0 %v428
        %v583 = vpop.f32.mrf.mxu0
        %v584 = vadd.f32 %v538, %v583
        %585 = vmatmul.f32.gmra.mxu0 %v429
        %v586 = vpop.f32.mrf.mxu0
        %v587 = vadd.f32 %v541, %v586
        %588 = vdwg.mxu0
        %v589 = vld [vmem:[#allocation2 + $0x2] sm:$0xff]
        %v590 = vld [vmem:[#allocation2 + $0xa] sm:$0xff]
        %s591 = scalar_lea.vmem [#allocation3], 512
        %v592 = vld [vmem:[%s591] sm:$0xff]
        %v593 = vld [vmem:[%s591 + $0x8] sm:$0xff]
        %v594 = vld [vmem:[%s591 + $0x10] sm:$0xff]
        %v595 = vld [vmem:[%s591 + $0x18] sm:$0xff]
        %v596 = vld [vmem:[%s591 + $0x20] sm:$0xff]
        %v597 = vld [vmem:[%s591 + $0x28] sm:$0xff]
        %v598 = vld [vmem:[%s591 + $0x30] sm:$0xff]
        %v599 = vld [vmem:[%s591 + $0x38] sm:$0xff]
        %v600 = vld [vmem:[%s591 + $0x40] sm:$0xff]
        %v601 = vld [vmem:[%s591 + $0x48] sm:$0xff]
        %v602 = vld [vmem:[%s591 + $0x50] sm:$0xff]
        %v603 = vld [vmem:[%s591 + $0x58] sm:$0xff]
        %v604 = vld [vmem:[%s591 + $0x60] sm:$0xff]
        %v605 = vld [vmem:[%s591 + $0x68] sm:$0xff]
        %v606 = vld [vmem:[%s591 + $0x70] sm:$0xff]
        %v607 = vld [vmem:[%s591 + $0x78] sm:$0xff]
        %v608 = vld [vmem:[%s591 + $0x80] sm:$0xff]
        %v609 = vld [vmem:[%s591 + $0x88] sm:$0xff]
        %v610 = vld [vmem:[%s591 + $0x90] sm:$0xff]
        %v611 = vld [vmem:[%s591 + $0x98] sm:$0xff]
        %v612 = vld [vmem:[%s591 + $0xa0] sm:$0xff]
        %v613 = vld [vmem:[%s591 + $0xa8] sm:$0xff]
        %v614 = vld [vmem:[%s591 + $0xb0] sm:$0xff]
        %v615 = vld [vmem:[%s591 + $0xb8] sm:$0xff]
        %v616 = vld [vmem:[%s591 + $0xc0] sm:$0xff]
        %v617 = vld [vmem:[%s591 + $0xc8] sm:$0xff]
        %v618 = vld [vmem:[%s591 + $0xd0] sm:$0xff]
        %v619 = vld [vmem:[%s591 + $0xd8] sm:$0xff]
        %v620 = vld [vmem:[%s591 + $0xe0] sm:$0xff]
        %v621 = vld [vmem:[%s591 + $0xe8] sm:$0xff]
        %v622 = vld [vmem:[%s591 + $0xf0] sm:$0xff]
        %v623 = vld [vmem:[%s591 + $0xf8] sm:$0xff]
        %624 = vmatpush.msra.mxu0 %v622
        %625 = vmatpush.msra.mxu0 %v620
        %626 = vmatpush.msra.mxu0 %v618
        %627 = vmatpush.msra.mxu0 %v616
        %628 = vmatpush.msra.mxu0 %v614
        %629 = vmatpush.msra.mxu0 %v612
        %630 = vmatpush.msra.mxu0 %v610
        %631 = vmatpush.msra.mxu0 %v608
        %632 = vmatpush.msra.mxu0 %v606
        %633 = vmatpush.msra.mxu0 %v604
        %634 = vmatpush.msra.mxu0 %v602
        %635 = vmatpush.msra.mxu0 %v600
        %636 = vmatpush.msra.mxu0 %v598
        %637 = vmatpush.msra.mxu0 %v596
        %638 = vmatpush.msra.mxu0 %v594
        %639 = vmatpush.msra.mxu0 %v592
        %640 = vmatmul.f32.gmra.mxu0 %v589
        %v641 = vpop.f32.mrf.mxu0
        %v642 = vadd.f32 0.0, %v641
        %643 = vmatmul.f32.gmra.mxu0 %v590
        %v644 = vpop.f32.mrf.mxu0
        %v645 = vadd.f32 0.0, %v644
        %646 = vdwg.mxu0
        %647 = vmatpush.msra.mxu0 %v623
        %648 = vmatpush.msra.mxu0 %v621
        %649 = vmatpush.msra.mxu0 %v619
        %650 = vmatpush.msra.mxu0 %v617
        %651 = vmatpush.msra.mxu0 %v615
        %652 = vmatpush.msra.mxu0 %v613
        %653 = vmatpush.msra.mxu0 %v611
        %654 = vmatpush.msra.mxu0 %v609
        %655 = vmatpush.msra.mxu0 %v607
        %656 = vmatpush.msra.mxu0 %v605
        %657 = vmatpush.msra.mxu0 %v603
        %658 = vmatpush.msra.mxu0 %v601
        %659 = vmatpush.msra.mxu0 %v599
        %660 = vmatpush.msra.mxu0 %v597
        %661 = vmatpush.msra.mxu0 %v595
        %662 = vmatpush.msra.mxu0 %v593
        %663 = vmatmul.f32.gmra.mxu0 %v589
        %v664 = vpop.f32.mrf.mxu0
        %v665 = vadd.f32 0.0, %v664
        %666 = vmatmul.f32.gmra.mxu0 %v590
        %v667 = vpop.f32.mrf.mxu0
        %v668 = vadd.f32 0.0, %v667
        %669 = vdwg.mxu0
        %v670 = vadd.f32 %v561, %v642
        %v671 = vadd.f32 %v584, %v665
        %v672 = vadd.f32 %v564, %v645
        %v673 = vadd.f32 %v587, %v668
        %v674 = vld [vmem:[%s4] sm:$0x3]
        %v676 = vperm.slane %v674, 0
        %v677 = vperm.slane %v674, 1
        %v680 = vadd.f32 %v670, %v676
        %v681 = vadd.f32 %v671, %v677
        %v682 = vadd.f32 %v672, %v676
        %v683 = vadd.f32 %v673, %v677
        %v684 = vmax.f32 %v680, 0.0
        %v685 = vmax.f32 %v681, 0.0
        %v686 = vmax.f32 %v682, 0.0
        %v687 = vmax.f32 %v683, 0.0
        %vm688 = vcmask 130048
        %v690 = vsel %vm688, 1.0, 0
        %692 = vmatpush.msra.mxu0 0.0
        %693 = vmatpush.msra.mxu0 0.0
        %694 = vmatpush.msra.mxu0 0.0
        %695 = vmatpush.msra.mxu0 0.0
        %696 = vmatpush.msra.mxu0 0.0
        %697 = vmatpush.msra.mxu0 0.0
        %698 = vmatpush.msra.mxu0 0.0
        %699 = vmatpush.msra.mxu0 0.0
        %700 = vmatpush.msra.mxu0 0.0
        %701 = vmatpush.msra.mxu0 0.0
        %702 = vmatpush.msra.mxu0 0.0
        %703 = vmatpush.msra.mxu0 0.0
        %704 = vmatpush.msra.mxu0 0.0
        %705 = vmatpush.msra.mxu0 0.0
        %706 = vmatpush.msra.mxu0 %v686
        %707 = vmatpush.msra.mxu0 %v684
        %708 = vmatmul.f32.gmra.mxu0 %v690
        %v709 = vpop.f32.mrf.mxu0
        %v710 = vadd.f32 0.0, %v709
        %711 = vdwg.mxu0
        %712 = vmatpush.msra.mxu0 0.0
        %713 = vmatpush.msra.mxu0 0.0
        %714 = vmatpush.msra.mxu0 0.0
        %715 = vmatpush.msra.mxu0 0.0
        %716 = vmatpush.msra.mxu0 0.0
        %717 = vmatpush.msra.mxu0 0.0
        %718 = vmatpush.msra.mxu0 0.0
        %719 = vmatpush.msra.mxu0 0.0
        %720 = vmatpush.msra.mxu0 0.0
        %721 = vmatpush.msra.mxu0 0.0
        %722 = vmatpush.msra.mxu0 0.0
        %723 = vmatpush.msra.mxu0 0.0
        %724 = vmatpush.msra.mxu0 0.0
        %725 = vmatpush.msra.mxu0 0.0
        %726 = vmatpush.msra.mxu0 %v687
        %727 = vmatpush.msra.mxu0 %v685
        %728 = vmatmul.f32.gmra.mxu0 %v690
        %v729 = vpop.f32.mrf.mxu0
        %v730 = vadd.f32 0.0, %v729
        %731 = vdwg.mxu0
        %v732 = vld [vmem:[%s5] sm:$0xff]
        %v733 = vld [vmem:[%s5 + $0x8] sm:$0xff]
        %v734 = vld [vmem:[%s5 + $0x10] sm:$0xff]
        %v735 = vld [vmem:[%s5 + $0x18] sm:$0xff]
        %v736 = vld [vmem:[%s5 + $0x20] sm:$0xff]
        %v737 = vld [vmem:[%s5 + $0x28] sm:$0xff]
        %v738 = vld [vmem:[%s5 + $0x30] sm:$0xff]
        %v739 = vld [vmem:[%s5 + $0x38] sm:$0xff]
        %v740 = vld [vmem:[%s5 + $0x40] sm:$0xff]
        %v741 = vld [vmem:[%s5 + $0x48] sm:$0xff]
        %v742 = vld [vmem:[%s5 + $0x50] sm:$0xff]
        %v743 = vld [vmem:[%s5 + $0x58] sm:$0xff]
        %v744 = vld [vmem:[%s5 + $0x60] sm:$0xff]
        %v745 = vld [vmem:[%s5 + $0x68] sm:$0xff]
        %v746 = vld [vmem:[%s5 + $0x70] sm:$0xff]
        %v747 = vld [vmem:[%s5 + $0x78] sm:$0xff]
        %v748 = vld [vmem:[%s5 + $0x80] sm:$0xff]
        %v749 = vld [vmem:[%s5 + $0x88] sm:$0xff]
        %v750 = vld [vmem:[%s5 + $0x90] sm:$0xff]
        %v751 = vld [vmem:[%s5 + $0x98] sm:$0xff]
        %v752 = vld [vmem:[%s5 + $0xa0] sm:$0xff]
        %v753 = vld [vmem:[%s5 + $0xa8] sm:$0xff]
        %v754 = vld [vmem:[%s5 + $0xb0] sm:$0xff]
        %v755 = vld [vmem:[%s5 + $0xb8] sm:$0xff]
        %v756 = vld [vmem:[%s5 + $0xc0] sm:$0xff]
        %v757 = vld [vmem:[%s5 + $0xc8] sm:$0xff]
        %v758 = vld [vmem:[%s5 + $0xd0] sm:$0xff]
        %v759 = vld [vmem:[%s5 + $0xd8] sm:$0xff]
        %v760 = vld [vmem:[%s5 + $0xe0] sm:$0xff]
        %v761 = vld [vmem:[%s5 + $0xe8] sm:$0xff]
        %v762 = vld [vmem:[%s5 + $0xf0] sm:$0xff]
        %v763 = vld [vmem:[%s5 + $0xf8] sm:$0xff]
        %v764 = vld [vmem:[%s6] sm:$0x1]
        %765 = vmatpush.msra.mxu0 %v747
        %766 = vmatpush.msra.mxu0 %v746
        %767 = vmatpush.msra.mxu0 %v745
        %768 = vmatpush.msra.mxu0 %v744
        %769 = vmatpush.msra.mxu0 %v743
        %770 = vmatpush.msra.mxu0 %v742
        %771 = vmatpush.msra.mxu0 %v741
        %772 = vmatpush.msra.mxu0 %v740
        %773 = vmatpush.msra.mxu0 %v739
        %774 = vmatpush.msra.mxu0 %v738
        %775 = vmatpush.msra.mxu0 %v737
        %776 = vmatpush.msra.mxu0 %v736
        %777 = vmatpush.msra.mxu0 %v735
        %778 = vmatpush.msra.mxu0 %v734
        %779 = vmatpush.msra.mxu0 %v733
        %780 = vmatpush.msra.mxu0 %v732
        %781 = vmatmul.f32.gmra.mxu0 %v710
        %v782 = vpop.f32.mrf.mxu0
        %v783 = vadd.f32 %v764, %v782
        %784 = vdwg.mxu0
        %785 = vmatpush.msra.mxu0 %v763
        %786 = vmatpush.msra.mxu0 %v762
        %787 = vmatpush.msra.mxu0 %v761
        %788 = vmatpush.msra.mxu0 %v760
        %789 = vmatpush.msra.mxu0 %v759
        %790 = vmatpush.msra.mxu0 %v758
        %791 = vmatpush.msra.mxu0 %v757
        %792 = vmatpush.msra.mxu0 %v756
        %793 = vmatpush.msra.mxu0 %v755
        %794 = vmatpush.msra.mxu0 %v754
        %795 = vmatpush.msra.mxu0 %v753
        %796 = vmatpush.msra.mxu0 %v752
        %797 = vmatpush.msra.mxu0 %v751
        %798 = vmatpush.msra.mxu0 %v750
        %799 = vmatpush.msra.mxu0 %v749
        %800 = vmatpush.msra.mxu0 %v748
        %801 = vmatmul.f32.gmra.mxu0 %v730
        %v802 = vpop.f32.mrf.mxu0
        %v803 = vadd.f32 %v783, %v802
        %804 = vdwg.mxu0
        %vm805 = vcmask 73728
        %806 = vst.msk [vmem:[%s287] sm:$0x1] %vm805, %v803
        %s807 = sand.u32 %s182, 1
        %s808 = scalar_lea.sflag [#allocation5], %s807
        %s809 = sand.u32 %s182, 1
        %s810 = scalar_lea.vmem [#allocation6], %s809
        // Predicated region
        $region53: #{model_wrapper_forward.1} parent=47 // pred_check
          %p811 = pneg %p192
        $region54: #{model_wrapper_forward.1} parent=47 // pred_check_branch
          %813 = sbr.rel (%p811) target = $region56
        $region55: #{model_wrapper_forward.1} parent=47 // pred_region
          %815 = vsyncadd %s808, 0
          %s816 = scalar_lea.hbm %s7, %s22
          %s818 = sshll.u32 %s810, 4
          %s819 = int_to_ptr.vmem [resolvable:$true] %s818
          %s820 = sshll.u32 %s816, 4
          %s821 = int_to_ptr.hbm [resolvable:$true] %s820
          %823 = dma.vmem_to_hbm [thread:$0]  %s819, 16, %s821, %s808
        $region56: #{model_wrapper_forward.1} parent=47 // pred_fallthru
          _
      $region48: #{model_wrapper_forward.1} parent=5 // pred_fallthru
        _
      %p824 = scmp.le.s32.totalorder 2, %s17
      // Predicated region
      $region57: #{model_wrapper_forward.1} parent=5 // pred_check
        %p825 = pneg %p824
      $region58: #{model_wrapper_forward.1} parent=5 // pred_check_branch
        %827 = sbr.rel (%p825) target = $region60
      $region59: #{model_wrapper_forward.1} parent=5 // pred_region
        %s828 = ssub.s32 %s17, 2
        // Predicated region
        $region61: #{model_wrapper_forward.1} parent=59 // pred_check
          %p829 = pneg %p198
        $region62: #{model_wrapper_forward.1} parent=59 // pred_check_branch
          %831 = sbr.rel (%p829) target = $region64
        $region63: #{model_wrapper_forward.1} parent=59 // pred_region
          %s832 = sand.u32 %s183, 1
          %s833 = scalar_lea.sflag [#allocation5], %s832
          %s834 = sand.u32 %s183, 1
          %s835 = scalar_lea.vmem [#allocation6], %s834
          %837 = dma.done %s833, 16
        $region64: #{model_wrapper_forward.1} parent=59 // pred_fallthru
          _
      $region60: #{model_wrapper_forward.1} parent=5 // pred_fallthru
        _
    $region6: #{model_wrapper_forward.1} parent=1 // loop_footer
      %s21 = sadd.s32 1, %s17
    $region7: #{model_wrapper_forward.1} parent=1 // loop_footer_branch
      %16 = sbr.rel target = $region3
    $region8: #{model_wrapper_forward.1} parent=1 // loop_exit
      _
    %838 = vsyncpa [#allocation4], 1
    %s839 = scalar_lea.sflag [#allocation4], 1
    %840 = vsyncpa %s839, 1
    %841 = vsyncpa [#allocation5], 1
    %s842 = scalar_lea.sflag [#allocation5], 1
    %843 = vsyncpa %s842, 1

</llo_original>
